<compile_context>
chip_gen: v7x
topology: tpu7x:2x2x1
jax: 0.10.0
libtpu: 0.0.40
codegen_flags: <defaults>
</compile_context>

<pallas_src>
import functools

import jax
import jax.numpy as jnp
from jax.experimental import pallas as pl
from jax.experimental.pallas import tpu as pltpu


def _sigmoid(v):
    return 1.0 / (1.0 + jnp.exp(-v))


def _stable_expm1(x):
    # exp(x) - 1 loses ~4 digits near x ~ 1e-4; use the Taylor series there
    # (rel. error < 2e-8 at the 0.1 switch point) to match torch.expm1.
    series = x * (1.0 + x * (0.5 + x * (1.0 / 6.0 + x * (1.0 / 24.0 + x / 120.0))))
    return jnp.where(x < 0.1, series, jnp.exp(x) - 1.0)


def _choose_fold(batch, n):
    """Fold batch into sublanes when B < 8 (avoid 6/8 wasted sublanes)."""
    if batch >= 8:
        return 1
    cand_128 = None   # smallest fold: rows >= 8 and cols % 128 == 0 (clean tiling)
    cand_any = None   # smallest fold: rows >= 8
    best_rows = 1     # largest fold keeping cols >= 128
    for f in range(1, 65):
        if n % f or (n // f) < 128:
            continue
        best_rows = f
        if batch * f >= 8:
            if cand_any is None:
                cand_any = f
            if (n // f) % 128 == 0 and cand_128 is None:
                cand_128 = f
    return cand_128 or cand_any or best_rows


def _choose_tile_cols(rows, ncol, itemsize, max_tile_cols, dbl_buf_budget_bytes):
    """Largest 128-multiple tile s.t. 2 inputs x 2 buffers fit the VMEM budget."""
    cap = dbl_buf_budget_bytes // (4 * rows * itemsize)
    cap = max(128, (cap // 128) * 128)
    tn = min(cap, max_tile_cols)
    if ncol >= 128:
        tn = min(tn, (ncol // 128) * 128)   # never exceed the array width
    return max(tn, 128)


def _fused_l1_kernel(times_ref, img_ref, noise_ref, out_ref, sched_ref,
                     *, ncol, tn, cbpp, mask_tail):
    p = pl.program_id(0)          # parallel partition of the feature range
    j = pl.program_id(1)          # reduction axis: column blocks in partition

    @pl.when(j == 0)
    def _init():
        # Hoisted per-row schedule math (EUP work, once per partition).
        t = times_ref[...]                                      # (rows, 1) f32
        x = 1e-4 + 10.0 * t * t
        log_snr = -jnp.log(jnp.maximum(_stable_expm1(x), 1e-20))
        sched_ref[0] = jnp.sqrt(_sigmoid(log_snr))              # alpha
        sched_ref[1] = jnp.sqrt(_sigmoid(-log_snr))             # sigma
        out_ref[...] = jnp.zeros_like(out_ref)

    alpha = sched_ref[0]                                        # (rows, 1)
    sigma = sched_ref[1]

    # Stream native dtype, upcast in-register (v5e VPU has no bf16 math).
    x0 = img_ref[...].astype(jnp.float32) * 2.0 - 1.0           # normalize
    # TODO(synk): generating noise in-kernel (pltpu.prng_seed + Box-Muller /
    # stateful_normal) would remove this second HBM stream (~2x traffic); it is
    # kept as an explicit input so the loss stays verifiable against the ref.
    nz = noise_ref[...].astype(jnp.float32)
    x_noised = x0 * alpha + nz * sigma                          # q_sample

    # TODO(synk): self.model is an external U-Net passed to the constructor;
    # identity placeholder keeps the surrounding diffusion math exact.
    model_out = x_noised

    a = jnp.abs(model_out - nz)                                 # (rows, tn)

    if mask_tail:  # static: only emitted when ncol % tn != 0
        col0 = (p * cbpp + j) * tn
        lane = jax.lax.broadcasted_iota(jnp.int32, a.shape, 1)
        a = jnp.where(col0 + lane < ncol, a, 0.0)

    # Lane-dense accumulation: add 128-wide strips (vreg-aligned slices), keep
    # the cross-lane reduce out of the per-step loop.
    rows = a.shape[0]
    acc = jnp.zeros((rows, 128), jnp.float32)
    for k in range(tn // 128):
        acc = acc + a[:, k * 128:(k + 1) * 128]
    out_ref[...] += acc


def continuous_time_gaussian_diffusion_loss(
        img, times, noise, *, p2_gamma=0.0, p2_k=1.0,
        max_tile_cols=32768, dbl_buf_budget_bytes=24 << 20):
    """Fused forward loss of ContinuousTimeGaussianDiffusion (identity model)."""
    b, c, h, w = img.shape
    n = c * h * w

    fold = _choose_fold(b, n)
    rows, ncol = b * fold, n // fold

    # Free row-major reshapes: no pad, no dtype copy in HBM.
    img2d = img.reshape(rows, ncol)
    noise2d = noise.reshape(rows, ncol)
    times_rows = jnp.repeat(times.astype(jnp.float32), fold).reshape(rows, 1)

    itemsize = jnp.dtype(img.dtype).itemsize
    tn = _choose_tile_cols(rows, ncol, itemsize, max_tile_cols,
                           dbl_buf_budget_bytes)
    ncb = pl.cdiv(ncol, tn)                      # total column blocks
    num_par = 2 if (ncb >= 2 and ncb % 2 == 0) else 1   # v7x: 2nd TensorCore
    cbpp = ncb // num_par                        # column blocks per partition
    mask_tail = (ncol % tn) != 0

    kernel = functools.partial(_fused_l1_kernel, ncol=ncol, tn=tn, cbpp=cbpp,
                               mask_tail=mask_tail)

    # 2 streamed inputs x 2 pipeline buffers; keep scoped VMEM under v7x's
    # 64 MiB physical while raising v5e's 16 MiB default.
    in_bytes = 4 * rows * tn * itemsize
    vmem_limit = int(min(max(2 * in_bytes, 16 << 20), 56 << 20))

    partial_sums = pl.pallas_call(
        kernel,
        out_shape=jax.ShapeDtypeStruct((num_par, rows, 128), jnp.float32),
        grid_spec=pltpu.PrefetchScalarGridSpec(
            num_scalar_prefetch=0,
            grid=(num_par, cbpp),
            in_specs=[
                pl.BlockSpec((rows, 1), lambda p, j: (0, 0)),               # times
                pl.BlockSpec((rows, tn), lambda p, j: (0, p * cbpp + j)),   # img
                pl.BlockSpec((rows, tn), lambda p, j: (0, p * cbpp + j)),   # noise
            ],
            out_specs=pl.BlockSpec((None, rows, 128), lambda p, j: (p, 0, 0)),
            scratch_shapes=[pltpu.VMEM((2, rows, 1), jnp.float32)],  # alpha/sigma
        ),
        compiler_params=pltpu.CompilerParams(
            dimension_semantics=("parallel", "arbitrary"),
            vmem_limit_bytes=vmem_limit,
        ),
    )(times_rows, img2d, noise2d)

    # Tiny O(B) epilogue: cross-lane/partition reduce, per-batch mean, p2
    # weight computed from the full `times` (not a last-block recompute).
    per_row = jnp.sum(partial_sums, axis=(0, 2))              # (rows,)
    per_batch = per_row.reshape(b, fold).sum(axis=1) / float(n)
    if p2_gamma != 0.0:
        t = times.astype(jnp.float32)
        log_snr = -jnp.log(jnp.maximum(jnp.expm1(1e-4 + 10.0 * t * t), 1e-20))
        per_batch = per_batch * (p2_k + jnp.exp(log_snr)) ** (-p2_gamma)
    return jnp.mean(per_batch)


def _reference_loss(img, times, noise, *, p2_gamma=0.0, p2_k=1.0):
    """Plain-JAX mirror of the PyTorch forward (identity model placeholder)."""
    img32 = img.astype(jnp.float32)
    noise32 = noise.astype(jnp.float32)
    x_start = img32 * 2.0 - 1.0
    t = times.astype(jnp.float32)
    log_snr = -jnp.log(jnp.maximum(jnp.expm1(1e-4 + 10.0 * t * t), 1e-20))
    pad = log_snr.reshape(-1, 1, 1, 1)
    alpha = jnp.sqrt(_sigmoid(pad))
    sigma = jnp.sqrt(_sigmoid(-pad))
    x_noised = x_start * alpha + noise32 * sigma
    model_out = x_noised  # identity placeholder, same as the kernel
    losses = jnp.mean(jnp.abs(model_out - noise32), axis=(1, 2, 3))
    if p2_gamma != 0.0:
        losses = losses * (p2_k + jnp.exp(log_snr)) ** (-p2_gamma)
    return jnp.mean(losses)


if __name__ == "__main__":
    key = jax.random.PRNGKey(0)

    # Case 1: module-default small shapes (image_size=16, channels=3), f32.
    k1, k2, k3, key = jax.random.split(key, 4)
    B, C, H, W = 2, 3, 16, 16
    img = jax.random.uniform(k1, (B, C, H, W), dtype=jnp.float32)
    times = jax.random.uniform(k2, (B,), dtype=jnp.float32)
    noise = jax.random.normal(k3, (B, C, H, W), dtype=jnp.float32)
    loss = jax.block_until_ready(
        continuous_time_gaussian_diffusion_loss(img, times, noise))
    ref = _reference_loss(img, times, noise)
    assert loss.shape == (), loss.shape
    assert bool(jnp.isfinite(loss)), "non-finite loss"
    assert bool(jnp.allclose(loss, ref, atol=1e-5, rtol=1e-4)), (loss, ref)

    # Case 2: bf16 inputs streamed natively + forced 2-partition tiling so the
    # "parallel" grid axis and multi-strip lane accumulation are exercised.
    k1, k2, k3, key = jax.random.split(key, 4)
    B, C, H, W = 2, 3, 32, 32
    img = jax.random.uniform(k1, (B, C, H, W), dtype=jnp.float32).astype(jnp.bfloat16)
    times = jax.random.uniform(k2, (B,), dtype=jnp.float32)
    noise = jax.random.normal(k3, (B, C, H, W), dtype=jnp.float32).astype(jnp.bfloat16)
    loss = jax.block_until_ready(
        continuous_time_gaussian_diffusion_loss(img, times, noise,
                                                max_tile_cols=384))
    ref = _reference_loss(img, times, noise)
    assert bool(jnp.allclose(loss, ref, atol=1e-5, rtol=1e-4)), (loss, ref)

    # Case 3: feature count not divisible by the tile -> in-kernel tail
    # masking + multi-step reduction axis, with a nonzero p2 weight.
    k1, k2, k3, key = jax.random.split(key, 4)
    B, C, H, W = 2, 3, 20, 20
    img = jax.random.uniform(k1, (B, C, H, W), dtype=jnp.float32)
    times = jax.random.uniform(k2, (B,), dtype=jnp.float32)
    noise = jax.random.normal(k3, (B, C, H, W), dtype=jnp.float32)
    loss = jax.block_until_ready(
        continuous_time_gaussian_diffusion_loss(
            img, times, noise, p2_gamma=0.5, p2_k=1.0, max_tile_cols=128))
    ref = _reference_loss(img, times, noise, p2_gamma=0.5, p2_k=1.0)
    assert bool(jnp.allclose(loss, ref, atol=1e-5, rtol=1e-4)), (loss, ref)

    print("KERNEL_OK")
</pallas_src>

<mosaic_0001>
module attributes {stable_mosaic.version = 11 : i64} {
  func.func @_fused_l1_kernel(%arg0: i32, %arg1: i32, %arg2: memref<12x1xf32, #tpu.memory_space<vmem>>, %arg3: memref<12x128xf32, #tpu.memory_space<vmem>>, %arg4: memref<12x128xf32, #tpu.memory_space<vmem>>, %arg5: memref<1x12x128xf32, #tpu.memory_space<vmem>>, %arg6: memref<2x12x1xf32, #tpu.memory_space<vmem>>) attributes {dimension_semantics = [#tpu.dimension_semantics<parallel>, #tpu.dimension_semantics<arbitrary>], iteration_bounds = array<i64: 1, 1>, scalar_prefetch = 0 : i64, scratch_operands = 1 : i64, tpu.core_type = #tpu.core_type<tc>, window_params = [{pipeline_mode = #tpu.pipeline_mode<synchronous>, transform_indices = @transform_0, window_bounds = array<i64: 12, 1>}, {transform_indices = @transform_1, window_bounds = array<i64: 12, 128>}, {transform_indices = @transform_2, window_bounds = array<i64: 12, 128>}, {transform_indices = @transform_3, window_bounds = array<i64: 1, 12, 128>}]} {
    %c0_i32 = arith.constant 0 : i32
    %0 = arith.cmpi eq, %arg1, %c0_i32 : i32
    %1 = arith.extui %0 : i1 to i32
    %c0_i32_0 = arith.constant 0 : i32
    %2 = arith.cmpi ne, %1, %c0_i32_0 : i32
    scf.if %2 {
      %c0_17 = arith.constant 0 : index
      %c0_18 = arith.constant 0 : index
      %28 = vector.load %arg2[%c0_17, %c0_18] : memref<12x1xf32, #tpu.memory_space<vmem>>, vector<12x1xf32>
      %cst_19 = arith.constant 1.000000e+01 : f32
      %29 = vector.broadcast %cst_19 : f32 to vector<12x1xf32>
      %30 = arith.mulf %29, %28 : vector<12x1xf32>
      %31 = arith.mulf %30, %28 : vector<12x1xf32>
      %cst_20 = arith.constant 9.99999974E-5 : f32
      %32 = vector.broadcast %cst_20 : f32 to vector<12x1xf32>
      %33 = arith.addf %32, %31 : vector<12x1xf32>
      %cst_21 = arith.constant 1.200000e+02 : f32
      %34 = vector.broadcast %cst_21 : f32 to vector<12x1xf32>
      %35 = arith.divf %33, %34 : vector<12x1xf32>
      %cst_22 = arith.constant 0.0416666679 : f32
      %36 = vector.broadcast %cst_22 : f32 to vector<12x1xf32>
      %37 = arith.addf %36, %35 : vector<12x1xf32>
      %38 = arith.mulf %33, %37 : vector<12x1xf32>
      %cst_23 = arith.constant 0.166666672 : f32
      %39 = vector.broadcast %cst_23 : f32 to vector<12x1xf32>
      %40 = arith.addf %39, %38 : vector<12x1xf32>
      %41 = arith.mulf %33, %40 : vector<12x1xf32>
      %cst_24 = arith.constant 5.000000e-01 : f32
      %42 = vector.broadcast %cst_24 : f32 to vector<12x1xf32>
      %43 = arith.addf %42, %41 : vector<12x1xf32>
      %44 = arith.mulf %33, %43 : vector<12x1xf32>
      %cst_25 = arith.constant 1.000000e+00 : f32
      %45 = vector.broadcast %cst_25 : f32 to vector<12x1xf32>
      %46 = arith.addf %45, %44 : vector<12x1xf32>
      %47 = arith.mulf %33, %46 : vector<12x1xf32>
      %cst_26 = arith.constant 1.000000e-01 : f32
      %48 = vector.broadcast %cst_26 : f32 to vector<12x1xf32>
      %49 = arith.cmpf olt, %33, %48 : vector<12x1xf32>
      %50 = math.exp %33 : vector<12x1xf32>
      %cst_27 = arith.constant 1.000000e+00 : f32
      %51 = vector.broadcast %cst_27 : f32 to vector<12x1xf32>
      %52 = arith.subf %50, %51 : vector<12x1xf32>
      %53 = arith.select %49, %47, %52 : vector<12x1xi1>, vector<12x1xf32>
      %cst_28 = arith.constant 9.99999968E-21 : f32
      %54 = vector.broadcast %cst_28 : f32 to vector<12x1xf32>
      %55 = arith.maximumf %53, %54 : vector<12x1xf32>
      %56 = math.log %55 : vector<12x1xf32>
      %cst_29 = arith.constant 0.000000e+00 : f32
      %57 = vector.broadcast %cst_29 : f32 to vector<12x1xf32>
      %58 = arith.subf %57, %56 : vector<12x1xf32>
      %cst_30 = arith.constant 0.000000e+00 : f32
      %59 = vector.broadcast %cst_30 : f32 to vector<12x1xf32>
      %60 = arith.subf %59, %58 : vector<12x1xf32>
      %61 = math.exp %60 : vector<12x1xf32>
      %cst_31 = arith.constant 1.000000e+00 : f32
      %62 = vector.broadcast %cst_31 : f32 to vector<12x1xf32>
      %63 = arith.addf %62, %61 : vector<12x1xf32>
      %cst_32 = arith.constant 1.000000e+00 : f32
      %64 = vector.broadcast %cst_32 : f32 to vector<12x1xf32>
      %65 = arith.divf %64, %63 : vector<12x1xf32>
      %66 = math.sqrt %65 : vector<12x1xf32>
      %c0_33 = arith.constant 0 : index
      %c0_34 = arith.constant 0 : index
      %c0_35 = arith.constant 0 : index
      %67 = vector.load %arg6[%c0_33, %c0_34, %c0_35] : memref<2x12x1xf32, #tpu.memory_space<vmem>>, vector<1x12x1xf32>
      %68 = vector.shape_cast %67 : vector<1x12x1xf32> to vector<12x1xf32>
      %69 = vector.shape_cast %66 : vector<12x1xf32> to vector<1x12x1xf32>
      tpu.vector_store %arg6[%c0_33, %c0_34, %c0_35], %69 {strides = array<i32>} : memref<2x12x1xf32, #tpu.memory_space<vmem>>, vector<1x12x1xf32>,
      %cst_36 = arith.constant 0.000000e+00 : f32
      %70 = vector.broadcast %cst_36 : f32 to vector<12x1xf32>
      %71 = arith.subf %70, %58 : vector<12x1xf32>
      %cst_37 = arith.constant 0.000000e+00 : f32
      %72 = vector.broadcast %cst_37 : f32 to vector<12x1xf32>
      %73 = arith.subf %72, %71 : vector<12x1xf32>
      %74 = math.exp %73 : vector<12x1xf32>
      %cst_38 = arith.constant 1.000000e+00 : f32
      %75 = vector.broadcast %cst_38 : f32 to vector<12x1xf32>
      %76 = arith.addf %75, %74 : vector<12x1xf32>
      %cst_39 = arith.constant 1.000000e+00 : f32
      %77 = vector.broadcast %cst_39 : f32 to vector<12x1xf32>
      %78 = arith.divf %77, %76 : vector<12x1xf32>
      %79 = math.sqrt %78 : vector<12x1xf32>
      %c1_40 = arith.constant 1 : index
      %c0_41 = arith.constant 0 : index
      %c0_42 = arith.constant 0 : index
      %80 = vector.load %arg6[%c1_40, %c0_41, %c0_42] : memref<2x12x1xf32, #tpu.memory_space<vmem>>, vector<1x12x1xf32>
      %81 = vector.shape_cast %80 : vector<1x12x1xf32> to vector<12x1xf32>
      %82 = vector.shape_cast %79 : vector<12x1xf32> to vector<1x12x1xf32>
      tpu.vector_store %arg6[%c1_40, %c0_41, %c0_42], %82 {strides = array<i32>} : memref<2x12x1xf32, #tpu.memory_space<vmem>>, vector<1x12x1xf32>,
      %cst_43 = arith.constant 0.000000e+00 : f32
      %83 = vector.broadcast %cst_43 : f32 to vector<12x128xf32>
      %c0_44 = arith.constant 0 : index
      %c0_45 = arith.constant 0 : index
      %c0_46 = arith.constant 0 : index
      %84 = vector.load %arg5[%c0_44, %c0_45, %c0_46] : memref<1x12x128xf32, #tpu.memory_space<vmem>>, vector<1x12x128xf32>
      %85 = vector.shape_cast %84 : vector<1x12x128xf32> to vector<12x128xf32>
      %86 = vector.shape_cast %83 : vector<12x128xf32> to vector<1x12x128xf32>
      tpu.vector_store %arg5[%c0_44, %c0_45, %c0_46], %86 {strides = array<i32>} : memref<1x12x128xf32, #tpu.memory_space<vmem>>, vector<1x12x128xf32>,
    } else {
    }
    %c0 = arith.constant 0 : index
    %c0_1 = arith.constant 0 : index
    %c0_2 = arith.constant 0 : index
    %3 = vector.load %arg6[%c0, %c0_1, %c0_2] : memref<2x12x1xf32, #tpu.memory_space<vmem>>, vector<1x12x1xf32>
    %4 = vector.shape_cast %3 : vector<1x12x1xf32> to vector<12x1xf32>
    %c1 = arith.constant 1 : index
    %c0_3 = arith.constant 0 : index
    %c0_4 = arith.constant 0 : index
    %5 = vector.load %arg6[%c1, %c0_3, %c0_4] : memref<2x12x1xf32, #tpu.memory_space<vmem>>, vector<1x12x1xf32>
    %6 = vector.shape_cast %5 : vector<1x12x1xf32> to vector<12x1xf32>
    %c0_5 = arith.constant 0 : index
    %c0_6 = arith.constant 0 : index
    %7 = vector.load %arg3[%c0_5, %c0_6] : memref<12x128xf32, #tpu.memory_space<vmem>>, vector<12x128xf32>
    %cst = arith.constant 2.000000e+00 : f32
    %8 = vector.broadcast %cst : f32 to vector<12x128xf32>
    %9 = arith.mulf %7, %8 : vector<12x128xf32>
    %cst_7 = arith.constant 1.000000e+00 : f32
    %10 = vector.broadcast %cst_7 : f32 to vector<12x128xf32>
    %11 = arith.subf %9, %10 : vector<12x128xf32>
    %c0_8 = arith.constant 0 : index
    %c0_9 = arith.constant 0 : index
    %12 = vector.load %arg4[%c0_8, %c0_9] : memref<12x128xf32, #tpu.memory_space<vmem>>, vector<12x128xf32>
    %13 = vector.broadcast %4 : vector<12x1xf32> to vector<12x128xf32>
    %14 = arith.mulf %11, %13 : vector<12x128xf32>
    %15 = vector.broadcast %6 : vector<12x1xf32> to vector<12x128xf32>
    %16 = arith.mulf %12, %15 : vector<12x128xf32>
    %17 = arith.addf %14, %16 : vector<12x128xf32>
    %18 = arith.subf %17, %12 : vector<12x128xf32>
    %19 = math.absf %18 : vector<12x128xf32>
    %cst_10 = arith.constant 0.000000e+00 : f32
    %20 = vector.broadcast %cst_10 : f32 to vector<12x128xf32>
    %21 = arith.addf %20, %19 : vector<12x128xf32>
    %c0_11 = arith.constant 0 : index
    %c0_12 = arith.constant 0 : index
    %c0_13 = arith.constant 0 : index
    %22 = vector.load %arg5[%c0_11, %c0_12, %c0_13] : memref<1x12x128xf32, #tpu.memory_space<vmem>>, vector<1x12x128xf32>
    %23 = vector.shape_cast %22 : vector<1x12x128xf32> to vector<12x128xf32>
    %24 = arith.addf %23, %21 : vector<12x128xf32>
    %c0_14 = arith.constant 0 : index
    %c0_15 = arith.constant 0 : index
    %c0_16 = arith.constant 0 : index
    %25 = vector.load %arg5[%c0_14, %c0_15, %c0_16] : memref<1x12x128xf32, #tpu.memory_space<vmem>>, vector<1x12x128xf32>
    %26 = vector.shape_cast %25 : vector<1x12x128xf32> to vector<12x128xf32>
    %27 = vector.shape_cast %24 : vector<12x128xf32> to vector<1x12x128xf32>
    tpu.vector_store %arg5[%c0_14, %c0_15, %c0_16], %27 {strides = array<i32>} : memref<1x12x128xf32, #tpu.memory_space<vmem>>, vector<1x12x128xf32>,
    return
  }
  func.func @transform_0(%arg0: i32, %arg1: i32) -> (i32, i32) {
    %c0_i32 = arith.constant 0 : i32
    %c0_i32_0 = arith.constant 0 : i32
    %c0_i32_1 = arith.constant 0 : i32
    return %c0_i32, %c0_i32_0 : i32, i32
  }
  func.func @transform_1(%arg0: i32, %arg1: i32) -> (i32, i32) {
    %c1_i32 = arith.constant 1 : i32
    %0 = arith.muli %arg0, %c1_i32 : i32
    %1 = arith.addi %0, %arg1 : i32
    %c0_i32 = arith.constant 0 : i32
    %c0_i32_0 = arith.constant 0 : i32
    return %c0_i32, %1 : i32, i32
  }
  func.func @transform_2(%arg0: i32, %arg1: i32) -> (i32, i32) {
    %c1_i32 = arith.constant 1 : i32
    %0 = arith.muli %arg0, %c1_i32 : i32
    %1 = arith.addi %0, %arg1 : i32
    %c0_i32 = arith.constant 0 : i32
    %c0_i32_0 = arith.constant 0 : i32
    return %c0_i32, %1 : i32, i32
  }
  func.func @transform_3(%arg0: i32, %arg1: i32) -> (i32, i32, i32) {
    %c0_i32 = arith.constant 0 : i32
    %c0_i32_0 = arith.constant 0 : i32
    %c0_i32_1 = arith.constant 0 : i32
    return %arg0, %c0_i32, %c0_i32_0 : i32, i32, i32
  }
}

</mosaic_0001>

<llo_original>
// kernel: tpu_custom_call.1
$region0: #{tpu_custom_call.1}
  #allocation0 [shape = 'u32[]', space=smem, size = 0x4, offset = 0x4, fixed_abs, tag = 'smem constant byte address 0x4 - core index']
  #allocation1 [shape = 'u32[144,128]{1,0:T(1,128)}', space=vmem, size = 0x12000, scoped, tag = 'internal scratch']
  #allocation2 [shape = 'f32[2,12,1]{2,1,0:T(8,128)}', space=vmem, size = 0x4000, scoped, tag = 'scratch operand']
  %s0 = inlined_call_operand.vmem [shape: f32[12,1], index: 0, kind: input, shape index: {}]
  %s1 = inlined_call_operand.vmem [shape: f32[12,128], index: 1, kind: input, shape index: {}]
  %s2 = inlined_call_operand.hbm [shape: f32[12,128], index: 2, kind: input, shape index: {}]
  %s3 = inlined_call_operand.vmem [shape: f32[1,12,128], index: 3, kind: output, shape index: {}]
  %s4 = sld [smem:[#allocation0]]
  $region30: #{tpu_custom_call.1} parent=0
    _
  %s6 = ssub.s32 1, %s4
  %s7 = scalar_select 0, %s6, %s4
  $region1: #{tpu_custom_call.1} parent=0
    #allocation3 [shape = 'u8[8192]{0}', space=vmem, size = 0x2000, scoped, tag = 'input window, operand 2, single buffered']
    #allocation4 [shape = 's32[1]{0}', space=sflag, size = 0x4, scoped, tag = 'scoped memory for tpu_custom_call.1']
    %8 = vsyncpa [#allocation4], 0
    // Predicated region
    $region2: #{tpu_custom_call.1} parent=1 // pred_check
      _
    $region3: #{tpu_custom_call.1} parent=1 // pred_check_branch
      %10 = sbr.rel (0) target = $region5
    $region4: #{tpu_custom_call.1} parent=1 // pred_region
      _
    $region5: #{tpu_custom_call.1} parent=1 // pred_fallthru
      _
    // Predicated region
    $region6: #{tpu_custom_call.1} parent=1 // pred_check
      _
    $region7: #{tpu_custom_call.1} parent=1 // pred_check_branch
      %12 = sbr.rel (0) target = $region9
    $region8: #{tpu_custom_call.1} parent=1 // pred_region
      %s13 = sadd.s32 0, 0
      %p14 = scmp.lt.s32.totalorder %s13, 0
      %s15 = scalar_select %p14, %s13, 0
      %s16 = smul.addr %s15, 8
      %s17 = scalar_lea.vmem %s1, %s16
      %s18 = sadd.s32 0, 0
    $region9: #{tpu_custom_call.1} parent=1 // pred_fallthru
      _
    // Predicated region
    $region10: #{tpu_custom_call.1} parent=1 // pred_check
      _
    $region11: #{tpu_custom_call.1} parent=1 // pred_check_branch
      %20 = sbr.rel (0) target = $region13
    $region12: #{tpu_custom_call.1} parent=1 // pred_region
      %s21 = sadd.s32 0, 0
      %s23 = ssub.s32 256, 256
      %24 = vsyncadd [#allocation4], %s23
      %s25 = smul.addr %s21, 128
      %s26 = scalar_lea.hbm %s2, %s25
      %s27 = sshll.u32 [#allocation3], 4
      %s28 = int_to_ptr.vmem [resolvable:$true] %s27
      %33 = dma.hbm_to_vmem [thread:$0]  %s26, 256, %s28, [#allocation4], 128, 128, 8
    $region13: #{tpu_custom_call.1} parent=1 // pred_fallthru
      _
    // Predicated region
    $region14: #{tpu_custom_call.1} parent=1 // pred_check
      _
    $region15: #{tpu_custom_call.1} parent=1 // pred_check_branch
      %35 = sbr.rel (0) target = $region17
    $region16: #{tpu_custom_call.1} parent=1 // pred_region
      %36 = dma.done [#allocation4], 256
    $region17: #{tpu_custom_call.1} parent=1 // pred_fallthru
      _
    %s37 = sadd.s32 0, 0
    %p38 = scmp.lt.s32.totalorder %s37, 0
    %s39 = scalar_select %p38, %s37, 0
    %s40 = smul.addr %s39, 8
    %s41 = scalar_lea.vmem %s1, %s40
    %s42 = sadd.s32 0, 0
    %p43 = scmp.lt.s32.totalorder %s42, 0
    %s44 = scalar_select %p43, %s42, 0
    %s45 = smul.addr %s44, 8
    %s46 = scalar_lea.vmem %s1, %s45
    %s47 = sadd.s32 0, 0
    %s48 = sadd.s32 0, 0
    %p49 = scmp.eq.s32.totalorder 0, 0
    // Predicated region
    $region18: #{tpu_custom_call.1} parent=1 // pred_check
      %p50 = pneg %p49
    $region19: #{tpu_custom_call.1} parent=1 // pred_check_branch
      %52 = sbr.rel (%p50) target = $region21
    $region20: #{tpu_custom_call.1} parent=1 // pred_region
      %v53 = vld [vmem:[%s0] sm:$0xff]
      %v54 = vld [vmem:[%s0 + $0x8] sm:$0xf]
      %v55 = vmul.f32 %v53, 10.0
      %v56 = vmul.f32 %v54, 10.0
      %v57 = vmul.f32 %v55, %v53
      %v58 = vmul.f32 %v56, %v54
      %v59 = vadd.f32 %v57, 0.0001
      %v60 = vadd.f32 %v58, 0.0001
      %v61 = vrcp.pop 120.0
      %v62 = vmul.f32 %v59, %v61
      %v63 = vmul.f32 %v60, %v61
      %v64 = vadd.f32 %v62, 0.041666668
      %v65 = vadd.f32 %v63, 0.041666668
      %v66 = vmul.f32 %v59, %v64
      %v67 = vmul.f32 %v60, %v65
      %v68 = vadd.f32 %v66, 0.16666667
      %v69 = vadd.f32 %v67, 0.16666667
      %v70 = vmul.f32 %v59, %v68
      %v71 = vmul.f32 %v60, %v69
      %v72 = vadd.f32 %v70, 0.5
      %v73 = vadd.f32 %v71, 0.5
      %v74 = vmul.f32 %v59, %v72
      %v75 = vmul.f32 %v60, %v73
      %v76 = vadd.f32 %v74, 1.0
      %v77 = vadd.f32 %v75, 1.0
      %v78 = vmul.f32 %v59, %v76
      %v79 = vmul.f32 %v60, %v77
      %vm80 = vcmp.lt.f32.partialorder %v59, 0.1
      %vm81 = vcmp.lt.f32.partialorder %v60, 0.1
      %v82 = vmul.f32 %v59, 1.442695
      %v83 = vpow.pop %v82
      %v84 = vmul.f32 %v60, 1.442695
      %v85 = vpow.pop %v84
      %v86 = vsub.f32 %v83, 1.0
      %v87 = vsub.f32 %v85, 1.0
      %v88 = vsel %vm80, %v78, %v86
      %v89 = vsel %vm81, %v79, %v87
      %v90 = vmax.f32 %v88, 1e-20
      %v91 = vmax.f32 %v89, 1e-20
      %v92 = vlog2.pop %v90
      %v93 = vmul.f32 %v92, 0.6931472
      %v94 = vlog2.pop %v91
      %v95 = vmul.f32 %v94, 0.6931472
      %v96 = vsub.f32 0.0, %v93
      %v97 = vsub.f32 0.0, %v95
      %v98 = vsub.f32 0.0, %v96
      %v99 = vsub.f32 0.0, %v97
      %v100 = vmul.f32 %v98, 1.442695
      %v101 = vpow.pop %v100
      %v102 = vmul.f32 %v99, 1.442695
      %v103 = vpow.pop %v102
      %v104 = vadd.f32 %v101, 1.0
      %v105 = vadd.f32 %v103, 1.0
      %v106 = vrcp.pop %v104
      %v107 = vmul.f32 1.0, %v106
      %v108 = vrcp.pop %v105
      %v109 = vmul.f32 1.0, %v108
      %v110 = vrsqrt.pop %v107
      %v111 = vmul.f32 %v107, %v110
      %vm112 = vcmp.eq.f32.partialorder %v107, inf
      %v113 = vsel %vm112, %v107, %v111
      %vm114 = vcmp.eq.f32.partialorder %v107, 0.0
      %v115 = vand.u32 %v107, 2147483648
      %v116 = vsel %vm114, %v115, %v113
      %v117 = vrsqrt.pop %v109
      %v118 = vmul.f32 %v109, %v117
      %vm119 = vcmp.eq.f32.partialorder %v109, inf
      %v120 = vsel %vm119, %v109, %v118
      %vm121 = vcmp.eq.f32.partialorder %v109, 0.0
      %v122 = vand.u32 %v109, 2147483648
      %v123 = vsel %vm121, %v122, %v120
      %vm124 = vcmask 7168
      %125 = vst.msk [vmem:[#allocation2] sm:$0xff] %vm124, %v116
      %vm126 = vcmask 3072
      %127 = vst.msk [vmem:[#allocation2 + $0x8] sm:$0xf] %vm126, %v123
      %v128 = vsub.f32 0.0, %v98
      %v129 = vsub.f32 0.0, %v99
      %v130 = vmul.f32 %v128, 1.442695
      %v131 = vpow.pop %v130
      %v132 = vmul.f32 %v129, 1.442695
      %v133 = vpow.pop %v132
      %v134 = vadd.f32 %v131, 1.0
      %v135 = vadd.f32 %v133, 1.0
      %v136 = vrcp.pop %v134
      %v137 = vmul.f32 1.0, %v136
      %v138 = vrcp.pop %v135
      %v139 = vmul.f32 1.0, %v138
      %v140 = vrsqrt.pop %v137
      %v141 = vmul.f32 %v137, %v140
      %vm142 = vcmp.eq.f32.partialorder %v137, inf
      %v143 = vsel %vm142, %v137, %v141
      %vm144 = vcmp.eq.f32.partialorder %v137, 0.0
      %v145 = vand.u32 %v137, 2147483648
      %v146 = vsel %vm144, %v145, %v143
      %v147 = vrsqrt.pop %v139
      %v148 = vmul.f32 %v139, %v147
      %vm149 = vcmp.eq.f32.partialorder %v139, inf
      %v150 = vsel %vm149, %v139, %v148
      %vm151 = vcmp.eq.f32.partialorder %v139, 0.0
      %v152 = vand.u32 %v139, 2147483648
      %v153 = vsel %vm151, %v152, %v150
      %s154 = scalar_lea.vmem [#allocation2], 16
      %155 = vst.msk [vmem:[%s154] sm:$0xff] %vm124, %v146
      %156 = vst.msk [vmem:[%s154 + $0x8] sm:$0xf] %vm126, %v153
      %157 = vst [vmem:[%s3] sm:$0xff] 0.0
      %158 = vst [vmem:[%s3 + $0x8] sm:$0xf] 0.0
    $region21: #{tpu_custom_call.1} parent=1 // pred_fallthru
      _
    %v159 = vld [vmem:[#allocation2] sm:$0xff]
    %v160 = vld [vmem:[#allocation2 + $0x8] sm:$0xf]
    %s161 = scalar_lea.vmem [#allocation2], 16
    %v162 = vld [vmem:[%s161] sm:$0xff]
    %v163 = vld [vmem:[%s161 + $0x8] sm:$0xf]
    %v164 = vld [vmem:[%s46] sm:$0xff]
    %v165 = vld [vmem:[%s46 + $0x8] sm:$0xf]
    %v166 = vmul.f32 %v164, 2.0
    %v167 = vmul.f32 %v165, 2.0
    %v168 = vsub.f32 %v166, 1.0
    %v169 = vsub.f32 %v167, 1.0
    %v170 = vld [vmem:[#allocation3] sm:$0xff]
    %v171 = vld [vmem:[#allocation3 + $0x8] sm:$0xf]
    %173 = vset.pattern.permute.xlu0 0
    %174 = vperm.xlu0 %173, %v159
    %v175 = vpop.permute.xlu0 %174
    %178 = vset.pattern.permute.xlu0 0
    %179 = vperm.xlu0 %178, %v160
    %v180 = vpop.permute.xlu0 %179
    %v182 = vmul.f32 %v168, %v175
    %v183 = vmul.f32 %v169, %v180
    %185 = vset.pattern.permute.xlu0 0
    %186 = vperm.xlu0 %185, %v162
    %v187 = vpop.permute.xlu0 %186
    %190 = vset.pattern.permute.xlu0 0
    %191 = vperm.xlu0 %190, %v163
    %v192 = vpop.permute.xlu0 %191
    %v194 = vmul.f32 %v170, %v187
    %v195 = vmul.f32 %v171, %v192
    %v196 = vadd.f32 %v182, %v194
    %v197 = vadd.f32 %v183, %v195
    %v198 = vsub.f32 %v196, %v170
    %v199 = vsub.f32 %v197, %v171
    %v200 = vand.u32 2147483647, %v198
    %v201 = vand.u32 2147483647, %v199
    %v202 = vadd.f32 %v200, 0.0
    %v203 = vadd.f32 %v201, 0.0
    %v204 = vld [vmem:[%s3] sm:$0xff]
    %v205 = vld [vmem:[%s3 + $0x8] sm:$0xf]
    %v206 = vadd.f32 %v204, %v202
    %v207 = vadd.f32 %v205, %v203
    %208 = vst [vmem:[%s3] sm:$0xff] %v206
    %209 = vst [vmem:[%s3 + $0x8] sm:$0xf] %v207
    // Predicated region
    $region22: #{tpu_custom_call.1} parent=1 // pred_check
      _
    $region23: #{tpu_custom_call.1} parent=1 // pred_check_branch
      %211 = sbr.rel (0) target = $region25
    $region24: #{tpu_custom_call.1} parent=1 // pred_region
      _
    $region25: #{tpu_custom_call.1} parent=1 // pred_fallthru
      _
    // Predicated region
    $region26: #{tpu_custom_call.1} parent=1 // pred_check
      _
    $region27: #{tpu_custom_call.1} parent=1 // pred_check_branch
      %213 = sbr.rel (0) target = $region29
    $region28: #{tpu_custom_call.1} parent=1 // pred_region
      _
    $region29: #{tpu_custom_call.1} parent=1 // pred_fallthru
      _
    %214 = vsyncpa [#allocation4], 1

</llo_original>
